<compile_context>
chip_gen: v5e
topology: v5e:2x2
jax: 0.10.0
libtpu: 0.0.40
codegen_flags: <defaults>
</compile_context>

<pallas_src>
from functools import partial

import jax
import jax.numpy as jnp
from jax.experimental import pallas as pl
from jax.experimental.pallas import tpu as pltpu

LANE = 512        # lane-dense last dim (multiple of 128)
TM_MAX = 1024     # max rows per tile -> 1024*512*4B = 2 MiB f32 per tile


def _round_up(a, m):
    return ((a + m - 1) // m) * m


def _linear_kernel(w_ref, b_ref, x_ref, o_ref):
    # w_ref, b_ref: (1, 1) scalars in SMEM
    # x_ref, o_ref: (TM, LANE) tiles in VMEM
    w = w_ref[0, 0]
    b = b_ref[0, 0]
    o_ref[...] = (x_ref[...] * w + b).astype(o_ref.dtype)


@jax.jit
def linear_regression_forward(x, weight, bias):
    """y = x @ weight.T + bias  with weight (1,1), bias (1,), x (N,1)."""
    n, f_in = x.shape
    assert f_in == 1 and weight.shape == (1, 1) and bias.shape == (1,)

    w_smem = weight.reshape(1, 1).astype(jnp.float32)
    b_smem = bias.reshape(1, 1).astype(jnp.float32)

    # ---- lane-dense view: (N,1) -> zero-padded (rows, LANE) ----------------
    flat = x.reshape(-1)                       # (N,)
    rows_needed = pl.cdiv(n, LANE)
    # rows per tile: multiple of 8 (sublane), capped at TM_MAX
    tm = min(TM_MAX, _round_up(rows_needed, 8))
    rows = _round_up(rows_needed, tm)          # grid divides evenly
    padded = rows * LANE
    if padded != n:
        flat = jnp.pad(flat, (0, padded - n))
    x2d = flat.reshape(rows, LANE)

    grid = (rows // tm,)

    y2d = pl.pallas_call(
        _linear_kernel,
        out_shape=jax.ShapeDtypeStruct((rows, LANE), x.dtype),
        grid=grid,
        in_specs=[
            pl.BlockSpec(memory_space=pltpu.SMEM),            # weight scalar
            pl.BlockSpec(memory_space=pltpu.SMEM),            # bias scalar
            pl.BlockSpec((tm, LANE), lambda i: (i, 0)),       # x tile
        ],
        out_specs=pl.BlockSpec((tm, LANE), lambda i: (i, 0)), # y tile
        compiler_params=pltpu.CompilerParams(
            dimension_semantics=("parallel",),
        ),
    )(w_smem, b_smem, x2d)

    # ---- back to (N, 1) ----------------------------------------------------
    return y2d.reshape(-1)[:n].reshape(n, 1)


if __name__ == "__main__":
    key = jax.random.PRNGKey(0)
    k_w, k_b, k_x1, k_x2 = jax.random.split(key, 4)

    # Deterministic parameter init mimicking nn.Linear(1, 1):
    # uniform(-1/sqrt(fan_in), 1/sqrt(fan_in)) with fan_in = 1.
    weight = jax.random.uniform(k_w, (1, 1), jnp.float32, minval=-1.0, maxval=1.0)
    bias = jax.random.uniform(k_b, (1,), jnp.float32, minval=-1.0, maxval=1.0)

    # Test 1: tiny batch, (8, 1) like the PyTorch module's typical input.
    x_small = jax.random.normal(k_x1, (8, 1), jnp.float32)
    y_small = linear_regression_forward(x_small, weight, bias)
    jax.block_until_ready(y_small)
    ref_small = x_small @ weight.T + bias
    assert y_small.shape == (8, 1)
    assert jnp.allclose(y_small, ref_small, atol=1e-6)

    # Test 2: larger batch that exercises multi-tile grid + lane padding.
    n_big = 2 * TM_MAX * LANE + 100   # not a multiple of LANE, grid of 3 tiles
    x_big = jax.random.normal(k_x2, (n_big, 1), jnp.float32)
    y_big = linear_regression_forward(x_big, weight, bias)
    jax.block_until_ready(y_big)
    ref_big = x_big @ weight.T + bias
    assert y_big.shape == (n_big, 1)
    assert jnp.allclose(y_big, ref_big, atol=1e-5)

    print("KERNEL_OK")
</pallas_src>

<mosaic_0001>
module attributes {stable_mosaic.version = 11 : i64} {
  func.func @_linear_kernel(%arg0: i32, %arg1: memref<1x1xf32, #tpu.memory_space<smem>>, %arg2: memref<1x1xf32, #tpu.memory_space<smem>>, %arg3: memref<8x512xf32, #tpu.memory_space<vmem>>, %arg4: memref<8x512xf32, #tpu.memory_space<vmem>>) attributes {dimension_semantics = [#tpu.dimension_semantics<parallel>], iteration_bounds = array<i64: 1>, scalar_prefetch = 0 : i64, scratch_operands = 0 : i64, tpu.core_type = #tpu.core_type<tc>, window_params = [{transform_indices = @transform_0, window_bounds = array<i64: 1, 1>}, {transform_indices = @transform_1, window_bounds = array<i64: 1, 1>}, {transform_indices = @transform_2, window_bounds = array<i64: 8, 512>}, {transform_indices = @transform_3, window_bounds = array<i64: 8, 512>}]} {
    %c0 = arith.constant 0 : index
    %c0_0 = arith.constant 0 : index
    %0 = memref.load %arg1[%c0, %c0_0] : memref<1x1xf32, #tpu.memory_space<smem>>
    %c0_1 = arith.constant 0 : index
    %c0_2 = arith.constant 0 : index
    %1 = memref.load %arg2[%c0_1, %c0_2] : memref<1x1xf32, #tpu.memory_space<smem>>
    %c0_3 = arith.constant 0 : index
    %c0_4 = arith.constant 0 : index
    %2 = vector.load %arg3[%c0_3, %c0_4] : memref<8x512xf32, #tpu.memory_space<vmem>>, vector<8x512xf32>
    %3 = vector.broadcast %0 : f32 to vector<8x512xf32>
    %4 = arith.mulf %2, %3 : vector<8x512xf32>
    %5 = vector.broadcast %1 : f32 to vector<8x512xf32>
    %6 = arith.addf %4, %5 : vector<8x512xf32>
    %c0_5 = arith.constant 0 : index
    %c0_6 = arith.constant 0 : index
    %7 = vector.load %arg4[%c0_5, %c0_6] : memref<8x512xf32, #tpu.memory_space<vmem>>, vector<8x512xf32>
    tpu.vector_store %arg4[%c0_5, %c0_6], %6 {strides = array<i32>} : memref<8x512xf32, #tpu.memory_space<vmem>>, vector<8x512xf32>,
    return
  }
  func.func @transform_0(%arg0: i32) -> (i32, i32) {
    %c0_i32 = arith.constant 0 : i32
    %c0_i32_0 = arith.constant 0 : i32
    %c0_i32_1 = arith.constant 0 : i32
    return %c0_i32, %c0_i32_0 : i32, i32
  }
  func.func @transform_1(%arg0: i32) -> (i32, i32) {
    %c0_i32 = arith.constant 0 : i32
    %c0_i32_0 = arith.constant 0 : i32
    %c0_i32_1 = arith.constant 0 : i32
    return %c0_i32, %c0_i32_0 : i32, i32
  }
  func.func @transform_2(%arg0: i32) -> (i32, i32) {
    %c0_i32 = arith.constant 0 : i32
    %c0_i32_0 = arith.constant 0 : i32
    return %arg0, %c0_i32 : i32, i32
  }
  func.func @transform_3(%arg0: i32) -> (i32, i32) {
    %c0_i32 = arith.constant 0 : i32
    %c0_i32_0 = arith.constant 0 : i32
    return %arg0, %c0_i32 : i32, i32
  }
}

</mosaic_0001>

<llo_original>
// kernel: linear_regression_forward.1
$region0: #{linear_regression_forward.1}
  #allocation0 [shape = 'u32[]', space=smem, size = 0x4, offset = 0x4, fixed_abs, tag = 'smem constant byte address 0x4 - core index']
  #allocation1 [shape = 'u32[72,128]{1,0:T(1,128)}', space=vmem, size = 0x9000, scoped, tag = 'internal scratch']
  #allocation2 [shape = 'f32[1,1]{1,0:T(1,128)S(6)}', space=smem, size = 0x200, scoped, tag = 'scoped memory for linear_regression_forward.1']
  #allocation3 [shape = 'f32[1,1]{1,0:T(1,128)S(6)}', space=smem, size = 0x200, scoped, tag = 'scoped memory for linear_regression_forward.1']
  %s0 = inlined_call_operand.<no memory space> [shape: f32[1,1], index: 0, kind: input, shape index: {}]
  %s1 = inlined_call_operand.<no memory space> [shape: f32[1,1], index: 1, kind: input, shape index: {}]
  %s2 = inlined_call_operand.vmem [shape: f32[8,512], index: 2, kind: input, shape index: {}]
  %s3 = inlined_call_operand.vmem [shape: f32[8,512], index: 3, kind: output, shape index: {}]
  %s4 = sld [smem:[#allocation0]]
  $region22: #{linear_regression_forward.1} parent=0
    _
  %s6 = ssub.s32 1, %s4
  %s7 = scalar_select 0, %s6, %s4
  %8 = sst [smem:[#allocation2]] %s0
  %9 = sst [smem:[#allocation3]] %s1
  // Predicated region
  $region2: #{linear_regression_forward.1} parent=0 // pred_check
    _
  $region3: #{linear_regression_forward.1} parent=0 // pred_check_branch
    %11 = sbr.rel (0) target = $region5
  $region4: #{linear_regression_forward.1} parent=0 // pred_region
    _
  $region5: #{linear_regression_forward.1} parent=0 // pred_fallthru
    _
  // Predicated region
  $region6: #{linear_regression_forward.1} parent=0 // pred_check
    _
  $region7: #{linear_regression_forward.1} parent=0 // pred_check_branch
    %13 = sbr.rel (0) target = $region9
  $region8: #{linear_regression_forward.1} parent=0 // pred_region
    _
  $region9: #{linear_regression_forward.1} parent=0 // pred_fallthru
    _
  // Predicated region
  $region10: #{linear_regression_forward.1} parent=0 // pred_check
    _
  $region11: #{linear_regression_forward.1} parent=0 // pred_check_branch
    %15 = sbr.rel (0) target = $region13
  $region12: #{linear_regression_forward.1} parent=0 // pred_region
    _
  $region13: #{linear_regression_forward.1} parent=0 // pred_fallthru
    _
  %s16 = sld [smem:[#allocation2]]
  %s17 = sld [smem:[#allocation3]]
  %v18 = vld [vmem:[%s2] sm:$0xff]
  %v19 = vld [vmem:[%s2 + $0x8] sm:$0xff]
  %v20 = vld [vmem:[%s2 + $0x10] sm:$0xff]
  %v21 = vld [vmem:[%s2 + $0x18] sm:$0xff]
  %v22 = vstv %s16
  %v23 = vmul.f32 %v18, %v22
  %v24 = vmul.f32 %v19, %v22
  %v25 = vmul.f32 %v20, %v22
  %v26 = vmul.f32 %v21, %v22
  %v27 = vstv %s17
  %v28 = vadd.f32 %v23, %v27
  %v29 = vadd.f32 %v24, %v27
  %v30 = vadd.f32 %v25, %v27
  %v31 = vadd.f32 %v26, %v27
  %32 = vst [vmem:[%s3] sm:$0xff] %v28
  %33 = vst [vmem:[%s3 + $0x8] sm:$0xff] %v29
  %34 = vst [vmem:[%s3 + $0x10] sm:$0xff] %v30
  %35 = vst [vmem:[%s3 + $0x18] sm:$0xff] %v31
  // Predicated region
  $region14: #{linear_regression_forward.1} parent=0 // pred_check
    _
  $region15: #{linear_regression_forward.1} parent=0 // pred_check_branch
    %37 = sbr.rel (0) target = $region17
  $region16: #{linear_regression_forward.1} parent=0 // pred_region
    _
  $region17: #{linear_regression_forward.1} parent=0 // pred_fallthru
    _
  // Predicated region
  $region18: #{linear_regression_forward.1} parent=0 // pred_check
    _
  $region19: #{linear_regression_forward.1} parent=0 // pred_check_branch
    %39 = sbr.rel (0) target = $region21
  $region20: #{linear_regression_forward.1} parent=0 // pred_region
    _
  $region21: #{linear_regression_forward.1} parent=0 // pred_fallthru
    _

</llo_original>
